<compile_context>
chip_gen: v7x
topology: tpu7x:2x2x1
jax: 0.10.0
libtpu: 0.0.40
codegen_flags: <defaults>
</compile_context>

<pallas_src>
import jax
import jax.numpy as jnp
from jax.experimental import pallas as pl
from jax.experimental.pallas import tpu as pltpu


def _round_up(n: int, m: int) -> int:
    return ((n + m - 1) // m) * m


def adapter_kernel(x_ref, w1_ref, b1_ref, w2_ref, b2_ref, o_ref):
    # relu -> fc1 (MXU, f32 acc) -> +b1, relu -> fc2 (MXU, f32 acc) -> +b2
    x = jnp.maximum(x_ref[...], 0.0)
    h = jnp.dot(x, w1_ref[...], preferred_element_type=jnp.float32)
    h = jnp.maximum(h + b1_ref[...].astype(jnp.float32), 0.0)
    h = h.astype(w2_ref.dtype)                  # keep 2nd matmul in native mode
    o = jnp.dot(h, w2_ref[...], preferred_element_type=jnp.float32)
    o_ref[...] = (o + b2_ref[...].astype(jnp.float32)).astype(o_ref.dtype)


def _chip_info():
    """(vmem_capacity_bytes, has_two_tensorcores) with safe fallbacks."""
    vmem_cap = 128 * 1024 * 1024
    try:
        info = pltpu.get_tpu_info()
        cap = getattr(info, "vmem_capacity_bytes", None)
        if cap:
            vmem_cap = int(cap)
    except Exception:
        pass
    multi_tc = False
    try:
        kind = jax.devices()[0].device_kind.lower()
        multi_tc = ("v7" in kind) or ("7x" in kind) or ("tpu7" in kind)
    except Exception:
        pass
    if vmem_cap <= 64 * 1024 * 1024:     # 64 MiB/TC -> v7x-class part
        multi_tc = True
    return vmem_cap, multi_tc


def adapter_forward(x, w1, b1, w2, b2, *, tile_m=2048):
    """Adapter_M forward (skip_connect=False).

    x : (..., input_dim)
    w1: (input_dim, hidden_dim)    b1: (hidden_dim,)
    w2: (hidden_dim, output_dim)   b2: (output_dim,)
    returns (..., output_dim) in x.dtype.
    """
    *lead, input_dim = x.shape
    hidden_dim = w1.shape[1]
    output_dim = w2.shape[1]
    assert w1.shape[0] == input_dim and w2.shape[0] == hidden_dim
    assert b1.shape == (hidden_dim,) and b2.shape == (output_dim,)

    # bf16 activations with wider weights -> cast weights once (halves weight
    # HBM traffic / residency, native bf16 MXU).  Biases stay as given (tiny;
    # added in f32 inside the kernel).
    if x.dtype == jnp.bfloat16:
        if w1.dtype != jnp.bfloat16:
            w1 = w1.astype(jnp.bfloat16)
        if w2.dtype != jnp.bfloat16:
            w2 = w2.astype(jnp.bfloat16)

    x2d = x.reshape(-1, input_dim)            # contiguous reshape: no copy
    m = x2d.shape[0]
    b1_2d = b1.reshape(1, hidden_dim)
    b2_2d = b2.reshape(1, output_dim)

    vmem_cap, multi_tc = _chip_info()
    budget = (vmem_cap * 3) // 4              # ~96 MiB v5e/v6e, ~48 MiB v7x

    x_bytes = x2d.dtype.itemsize
    w_bytes = w1.dtype.itemsize
    # Weights are requested single-buffered, but budget the double-buffered
    # fallback so that path still fits.
    wts_bytes = 2 * ((input_dim * hidden_dim + hidden_dim)
                     + (hidden_dim * output_dim + output_dim)) * w_bytes

    def vmem_needed(t):
        act = 2 * t * (input_dim + output_dim) * x_bytes          # dbl-buf x/out
        scratch = t * (input_dim + hidden_dim + output_dim) * 4   # f32 temps
        return act + scratch + wts_bytes

    # Row tile: multiple of 8 sublanes, as big as the VMEM budget allows.
    m8 = _round_up(max(m, 1), 8)
    tm = min(_round_up(max(tile_m, 8), 8), m8)
    while tm > 8 and vmem_needed(tm) > budget:
        tm = max(8, _round_up(tm // 2, 8))

    # Balance the two TensorCores on v7x-class chips: keep block count even.
    if multi_tc and m >= 256:
        nblk = pl.cdiv(m, tm)
        if nblk == 1:
            tm = _round_up(pl.cdiv(m, 2), 8)
        elif nblk % 2 == 1:
            tm = _round_up(pl.cdiv(m, nblk + 1), 8)

    grid = (pl.cdiv(m, tm),)
    vmem_limit = int(min(max(vmem_needed(tm) + (4 << 20), 24 << 20), budget))

    def build(single_buffer_weights):
        if single_buffer_weights:
            def w_spec(shape):
                return pl.BlockSpec(shape, lambda i: (0, 0),
                                    pipeline_mode=pl.Buffered(1))
        else:
            def w_spec(shape):
                return pl.BlockSpec(shape, lambda i: (0, 0))
        return pl.pallas_call(
            adapter_kernel,
            out_shape=jax.ShapeDtypeStruct((m, output_dim), x.dtype),
            grid_spec=pltpu.PrefetchScalarGridSpec(
                num_scalar_prefetch=0,
                grid=grid,
                in_specs=[
                    pl.BlockSpec((tm, input_dim), lambda i: (i, 0)),  # x (pipelined)
                    w_spec((input_dim, hidden_dim)),                  # W1 (resident)
                    w_spec((1, hidden_dim)),                          # b1 (resident)
                    w_spec((hidden_dim, output_dim)),                 # W2 (resident)
                    w_spec((1, output_dim)),                          # b2 (resident)
                ],
                out_specs=pl.BlockSpec((tm, output_dim), lambda i: (i, 0)),
            ),
            compiler_params=pltpu.CompilerParams(
                dimension_semantics=("parallel",),
                vmem_limit_bytes=vmem_limit,
            ),
        )

    try:
        out2d = build(True)(x2d, w1, b1_2d, w2, b2_2d)
    except Exception:
        # Fallback if this JAX build rejects pl.Buffered(1) on inputs.
        out2d = build(False)(x2d, w1, b1_2d, w2, b2_2d)

    return out2d.reshape(*lead, output_dim)


def make_params(key, input_dim, output_dim, mlp_ratio=0.25, dtype=jnp.float32):
    """Deterministic synthetic params (PyTorch-Linear-like uniform init)."""
    hidden_dim = int(input_dim * mlp_ratio)
    k1, k2, k3, k4 = jax.random.split(key, 4)
    bound1 = 1.0 / (input_dim ** 0.5)
    bound2 = 1.0 / (hidden_dim ** 0.5)
    # stored as (in, out) == transpose of PyTorch's (out, in)
    w1 = jax.random.uniform(k1, (input_dim, hidden_dim), jnp.float32, -bound1, bound1)
    b1 = jax.random.uniform(k2, (hidden_dim,), jnp.float32, -bound1, bound1)
    w2 = jax.random.uniform(k3, (hidden_dim, output_dim), jnp.float32, -bound2, bound2)
    b2 = jax.random.uniform(k4, (output_dim,), jnp.float32, -bound2, bound2)
    return (w1.astype(dtype), b1.astype(dtype), w2.astype(dtype), b2.astype(dtype))


def reference_forward(x, w1, b1, w2, b2):
    xf = jnp.maximum(x, 0.0).astype(jnp.float32)
    xs = xf @ w1.astype(jnp.float32) + b1.astype(jnp.float32)
    xs = jnp.maximum(xs, 0.0)          # skip_connect=False branch
    return xs @ w2.astype(jnp.float32) + b2.astype(jnp.float32)


if __name__ == "__main__":
    key = jax.random.PRNGKey(0)
    kx, kp, kx2, kp2 = jax.random.split(key, 4)

    # --- 1) small shapes consistent with the module (f32, single block) -----
    batch, seq, input_dim, output_dim = 2, 8, 32, 24       # hidden = 8
    x = jax.random.normal(kx, (batch, seq, input_dim), jnp.float32)
    w1, b1, w2, b2 = make_params(kp, input_dim, output_dim, mlp_ratio=0.25)

    out = adapter_forward(x, w1, b1, w2, b2)
    jax.block_until_ready(out)
    ref = reference_forward(x.reshape(-1, input_dim), w1, b1, w2, b2)
    ref = ref.reshape(batch, seq, output_dim)
    assert out.shape == (batch, seq, output_dim)
    assert jnp.allclose(out, ref, atol=2e-3, rtol=2e-3), "f32 mismatch vs reference"

    # --- 2) bf16 I/O, multi-block / ragged path (f32 weights get pre-cast) ---
    bt2, sq2, in2, out2 = 4, 128, 128, 96                   # M = 512
    xb = jax.random.normal(kx2, (bt2, sq2, in2), jnp.float32).astype(jnp.bfloat16)
    params_b = make_params(kp2, in2, out2, mlp_ratio=0.25, dtype=jnp.float32)

    outb = adapter_forward(xb, *params_b)
    jax.block_until_ready(outb)
    refb = reference_forward(
        xb.reshape(-1, in2),
        params_b[0].astype(jnp.bfloat16), params_b[1],
        params_b[2].astype(jnp.bfloat16), params_b[3],
    ).reshape(bt2, sq2, out2)
    assert outb.dtype == jnp.bfloat16
    assert jnp.allclose(outb.astype(jnp.float32), refb, atol=5e-2, rtol=5e-2), \
        "bf16 mismatch vs reference"

    print("KERNEL_OK")
</pallas_src>

<mosaic_0001>
module attributes {stable_mosaic.version = 11 : i64} {
  func.func @adapter_kernel(%arg0: i32, %arg1: memref<16x32xf32, #tpu.memory_space<vmem>>, %arg2: memref<32x8xf32, #tpu.memory_space<vmem>>, %arg3: memref<1x8xf32, #tpu.memory_space<vmem>>, %arg4: memref<8x24xf32, #tpu.memory_space<vmem>>, %arg5: memref<1x24xf32, #tpu.memory_space<vmem>>, %arg6: memref<16x24xf32, #tpu.memory_space<vmem>>) attributes {dimension_semantics = [#tpu.dimension_semantics<parallel>], iteration_bounds = array<i64: 1>, scalar_prefetch = 0 : i64, scratch_operands = 0 : i64, tpu.core_type = #tpu.core_type<tc>, window_params = [{transform_indices = @transform_0, window_bounds = array<i64: 16, 32>}, {pipeline_mode = #tpu.pipeline_mode<synchronous>, transform_indices = @transform_1, window_bounds = array<i64: 32, 8>}, {pipeline_mode = #tpu.pipeline_mode<synchronous>, transform_indices = @transform_2, window_bounds = array<i64: 1, 8>}, {pipeline_mode = #tpu.pipeline_mode<synchronous>, transform_indices = @transform_3, window_bounds = array<i64: 8, 24>}, {pipeline_mode = #tpu.pipeline_mode<synchronous>, transform_indices = @transform_4, window_bounds = array<i64: 1, 24>}, {transform_indices = @transform_5, window_bounds = array<i64: 16, 24>}]} {
    %c0 = arith.constant 0 : index
    %c0_0 = arith.constant 0 : index
    %0 = vector.load %arg1[%c0, %c0_0] : memref<16x32xf32, #tpu.memory_space<vmem>>, vector<16x32xf32>
    %cst = arith.constant 0.000000e+00 : f32
    %1 = vector.broadcast %cst : f32 to vector<16x32xf32>
    %2 = arith.maximumf %0, %1 : vector<16x32xf32>
    %c0_1 = arith.constant 0 : index
    %c0_2 = arith.constant 0 : index
    %3 = vector.load %arg2[%c0_1, %c0_2] : memref<32x8xf32, #tpu.memory_space<vmem>>, vector<32x8xf32>
    %cst_3 = arith.constant dense<0.000000e+00> : vector<16x8xf32>
    %4 = tpu.matmul %2, %3, %cst_3 {dimension_numbers = #tpu.dot_dimension_numbers<[1], [0], [0], [1], [0, 0, 1, 1], [], []>} : vector<16x32xf32>, vector<32x8xf32>, vector<16x8xf32> -> vector<16x8xf32>
    %c0_4 = arith.constant 0 : index
    %c0_5 = arith.constant 0 : index
    %5 = vector.load %arg3[%c0_4, %c0_5] : memref<1x8xf32, #tpu.memory_space<vmem>>, vector<1x8xf32>
    %6 = vector.broadcast %5 : vector<1x8xf32> to vector<16x8xf32>
    %7 = arith.addf %4, %6 : vector<16x8xf32>
    %cst_6 = arith.constant 0.000000e+00 : f32
    %8 = vector.broadcast %cst_6 : f32 to vector<16x8xf32>
    %9 = arith.maximumf %7, %8 : vector<16x8xf32>
    %c0_7 = arith.constant 0 : index
    %c0_8 = arith.constant 0 : index
    %10 = vector.load %arg4[%c0_7, %c0_8] : memref<8x24xf32, #tpu.memory_space<vmem>>, vector<8x24xf32>
    %cst_9 = arith.constant dense<0.000000e+00> : vector<16x24xf32>
    %11 = tpu.matmul %9, %10, %cst_9 {dimension_numbers = #tpu.dot_dimension_numbers<[1], [0], [0], [1], [0, 0, 1, 1], [], []>} : vector<16x8xf32>, vector<8x24xf32>, vector<16x24xf32> -> vector<16x24xf32>
    %c0_10 = arith.constant 0 : index
    %c0_11 = arith.constant 0 : index
    %12 = vector.load %arg5[%c0_10, %c0_11] : memref<1x24xf32, #tpu.memory_space<vmem>>, vector<1x24xf32>
    %13 = vector.broadcast %12 : vector<1x24xf32> to vector<16x24xf32>
    %14 = arith.addf %11, %13 : vector<16x24xf32>
    %c0_12 = arith.constant 0 : index
    %c0_13 = arith.constant 0 : index
    %15 = vector.load %arg6[%c0_12, %c0_13] : memref<16x24xf32, #tpu.memory_space<vmem>>, vector<16x24xf32>
    tpu.vector_store %arg6[%c0_12, %c0_13], %14 {strides = array<i32>} : memref<16x24xf32, #tpu.memory_space<vmem>>, vector<16x24xf32>,
    return
  }
  func.func @transform_0(%arg0: i32) -> (i32, i32) {
    %c0_i32 = arith.constant 0 : i32
    %c0_i32_0 = arith.constant 0 : i32
    return %arg0, %c0_i32 : i32, i32
  }
  func.func @transform_1(%arg0: i32) -> (i32, i32) {
    %c0_i32 = arith.constant 0 : i32
    %c0_i32_0 = arith.constant 0 : i32
    %c0_i32_1 = arith.constant 0 : i32
    return %c0_i32, %c0_i32_0 : i32, i32
  }
  func.func @transform_2(%arg0: i32) -> (i32, i32) {
    %c0_i32 = arith.constant 0 : i32
    %c0_i32_0 = arith.constant 0 : i32
    %c0_i32_1 = arith.constant 0 : i32
    return %c0_i32, %c0_i32_0 : i32, i32
  }
  func.func @transform_3(%arg0: i32) -> (i32, i32) {
    %c0_i32 = arith.constant 0 : i32
    %c0_i32_0 = arith.constant 0 : i32
    %c0_i32_1 = arith.constant 0 : i32
    return %c0_i32, %c0_i32_0 : i32, i32
  }
  func.func @transform_4(%arg0: i32) -> (i32, i32) {
    %c0_i32 = arith.constant 0 : i32
    %c0_i32_0 = arith.constant 0 : i32
    %c0_i32_1 = arith.constant 0 : i32
    return %c0_i32, %c0_i32_0 : i32, i32
  }
  func.func @transform_5(%arg0: i32) -> (i32, i32) {
    %c0_i32 = arith.constant 0 : i32
    %c0_i32_0 = arith.constant 0 : i32
    return %arg0, %c0_i32 : i32, i32
  }
}

module attributes {stable_mosaic.version = 11 : i64} {
  func.func @adapter_kernel(%arg0: i32, %arg1: memref<16x32xf32, #tpu.memory_space<vmem>>, %arg2: memref<32x8xf32, #tpu.memory_space<vmem>>, %arg3: memref<1x8xf32, #tpu.memory_space<vmem>>, %arg4: memref<8x24xf32, #tpu.memory_space<vmem>>, %arg5: memref<1x24xf32, #tpu.memory_space<vmem>>, %arg6: memref<16x24xf32, #tpu.memory_space<vmem>>) attributes {dimension_semantics = [#tpu.dimension_semantics<parallel>], iteration_bounds = array<i64: 1>, scalar_prefetch = 0 : i64, scratch_operands = 0 : i64, tpu.core_type = #tpu.core_type<tc>, window_params = [{transform_indices = @transform_0, window_bounds = array<i64: 16, 32>}, {pipeline_mode = #tpu.pipeline_mode<synchronous>, transform_indices = @transform_1, window_bounds = array<i64: 32, 8>}, {pipeline_mode = #tpu.pipeline_mode<synchronous>, transform_indices = @transform_2, window_bounds = array<i64: 1, 8>}, {pipeline_mode = #tpu.pipeline_mode<synchronous>, transform_indices = @transform_3, window_bounds = array<i64: 8, 24>}, {pipeline_mode = #tpu.pipeline_mode<synchronous>, transform_indices = @transform_4, window_bounds = array<i64: 1, 24>}, {transform_indices = @transform_5, window_bounds = array<i64: 16, 24>}]} {
    %c0 = arith.constant 0 : index
    %c0_0 = arith.constant 0 : index
    %0 = vector.load %arg1[%c0, %c0_0] : memref<16x32xf32, #tpu.memory_space<vmem>>, vector<16x32xf32>
    %cst = arith.constant 0.000000e+00 : f32
    %1 = vector.broadcast %cst : f32 to vector<16x32xf32>
    %2 = arith.maximumf %0, %1 : vector<16x32xf32>
    %c0_1 = arith.constant 0 : index
    %c0_2 = arith.constant 0 : index
    %3 = vector.load %arg2[%c0_1, %c0_2] : memref<32x8xf32, #tpu.memory_space<vmem>>, vector<32x8xf32>
    %cst_3 = arith.constant dense<0.000000e+00> : vector<16x8xf32>
    %4 = tpu.matmul %2, %3, %cst_3 {dimension_numbers = #tpu.dot_dimension_numbers<[1], [0], [0], [1], [0, 0, 1, 1], [], []>} : vector<16x32xf32>, vector<32x8xf32>, vector<16x8xf32> -> vector<16x8xf32>
    %c0_4 = arith.constant 0 : index
    %c0_5 = arith.constant 0 : index
    %5 = vector.load %arg3[%c0_4, %c0_5] : memref<1x8xf32, #tpu.memory_space<vmem>>, vector<1x8xf32>
    %6 = vector.broadcast %5 : vector<1x8xf32> to vector<16x8xf32>
    %7 = arith.addf %4, %6 : vector<16x8xf32>
    %cst_6 = arith.constant 0.000000e+00 : f32
    %8 = vector.broadcast %cst_6 : f32 to vector<16x8xf32>
    %9 = arith.maximumf %7, %8 : vector<16x8xf32>
    %c0_7 = arith.constant 0 : index
    %c0_8 = arith.constant 0 : index
    %10 = vector.load %arg4[%c0_7, %c0_8] : memref<8x24xf32, #tpu.memory_space<vmem>>, vector<8x24xf32>
    %cst_9 = arith.constant dense<0.000000e+00> : vector<16x24xf32>
    %11 = tpu.matmul %9, %10, %cst_9 {dimension_numbers = #tpu.dot_dimension_numbers<[1], [0], [0], [1], [0, 0, 1, 1], [], []>} : vector<16x8xf32>, vector<8x24xf32>, vector<16x24xf32> -> vector<16x24xf32>
    %c0_10 = arith.constant 0 : index
    %c0_11 = arith.constant 0 : index
    %12 = vector.load %arg5[%c0_10, %c0_11] : memref<1x24xf32, #tpu.memory_space<vmem>>, vector<1x24xf32>
    %13 = vector.broadcast %12 : vector<1x24xf32> to vector<16x24xf32>
    %14 = arith.addf %11, %13 : vector<16x24xf32>
    %c0_12 = arith.constant 0 : index
    %c0_13 = arith.constant 0 : index
    %15 = vector.load %arg6[%c0_12, %c0_13] : memref<16x24xf32, #tpu.memory_space<vmem>>, vector<16x24xf32>
    tpu.vector_store %arg6[%c0_12, %c0_13], %14 {strides = array<i32>} : memref<16x24xf32, #tpu.memory_space<vmem>>, vector<16x24xf32>,
    return
  }
  func.func @transform_0(%arg0: i32) -> (i32, i32) {
    %c0_i32 = arith.constant 0 : i32
    %c0_i32_0 = arith.constant 0 : i32
    return %arg0, %c0_i32 : i32, i32
  }
  func.func @transform_1(%arg0: i32) -> (i32, i32) {
    %c0_i32 = arith.constant 0 : i32
    %c0_i32_0 = arith.constant 0 : i32
    %c0_i32_1 = arith.constant 0 : i32
    return %c0_i32, %c0_i32_0 : i32, i32
  }
  func.func @transform_2(%arg0: i32) -> (i32, i32) {
    %c0_i32 = arith.constant 0 : i32
    %c0_i32_0 = arith.constant 0 : i32
    %c0_i32_1 = arith.constant 0 : i32
    return %c0_i32, %c0_i32_0 : i32, i32
  }
  func.func @transform_3(%arg0: i32) -> (i32, i32) {
    %c0_i32 = arith.constant 0 : i32
    %c0_i32_0 = arith.constant 0 : i32
    %c0_i32_1 = arith.constant 0 : i32
    return %c0_i32, %c0_i32_0 : i32, i32
  }
  func.func @transform_4(%arg0: i32) -> (i32, i32) {
    %c0_i32 = arith.constant 0 : i32
    %c0_i32_0 = arith.constant 0 : i32
    %c0_i32_1 = arith.constant 0 : i32
    return %c0_i32, %c0_i32_0 : i32, i32
  }
  func.func @transform_5(%arg0: i32) -> (i32, i32) {
    %c0_i32 = arith.constant 0 : i32
    %c0_i32_0 = arith.constant 0 : i32
    return %arg0, %c0_i32 : i32, i32
  }
}

</mosaic_0001>

<llo_original>
// kernel: tpu_custom_call.1
$region0: #{tpu_custom_call.1}
  #allocation0 [shape = 'u32[]', space=smem, size = 0x4, offset = 0x4, fixed_abs, tag = 'smem constant byte address 0x4 - core index']
  #allocation1 [shape = 'u32[144,128]{1,0:T(1,128)}', space=vmem, size = 0x12000, scoped, tag = 'internal scratch']
  %s0 = inlined_call_operand.vmem [shape: f32[16,32], index: 0, kind: input, shape index: {}]
  %s1 = inlined_call_operand.vmem [shape: f32[32,8], index: 1, kind: input, shape index: {}]
  %s2 = inlined_call_operand.vmem [shape: f32[1,8], index: 2, kind: input, shape index: {}]
  %s3 = inlined_call_operand.vmem [shape: f32[8,24], index: 3, kind: input, shape index: {}]
  %s4 = inlined_call_operand.vmem [shape: f32[1,24], index: 4, kind: input, shape index: {}]
  %s5 = inlined_call_operand.hbm [shape: f32[16,24], index: 5, kind: output, shape index: {}]
  %s6 = sld [smem:[#allocation0]]
  $region30: #{tpu_custom_call.1} parent=0
    _
  %s8 = ssub.s32 1, %s6
  %s9 = scalar_select 0, %s8, %s6
  $region1: #{tpu_custom_call.1} parent=0
    #allocation2 [shape = 'u8[8192]{0}', space=vmem, size = 0x2000, scoped, tag = 'output window, operand 0, single buffered']
    #allocation3 [shape = 's32[1]{0}', space=sflag, size = 0x4, scoped, tag = 'scoped memory for tpu_custom_call.1']
    %10 = vsyncpa [#allocation3], 0
    // Predicated region
    $region2: #{tpu_custom_call.1} parent=1 // pred_check
      _
    $region3: #{tpu_custom_call.1} parent=1 // pred_check_branch
      %12 = sbr.rel (0) target = $region5
    $region4: #{tpu_custom_call.1} parent=1 // pred_region
      _
    $region5: #{tpu_custom_call.1} parent=1 // pred_fallthru
      _
    // Predicated region
    $region6: #{tpu_custom_call.1} parent=1 // pred_check
      _
    $region7: #{tpu_custom_call.1} parent=1 // pred_check_branch
      %14 = sbr.rel (0) target = $region9
    $region8: #{tpu_custom_call.1} parent=1 // pred_region
      _
    $region9: #{tpu_custom_call.1} parent=1 // pred_fallthru
      _
    // Predicated region
    $region10: #{tpu_custom_call.1} parent=1 // pred_check
      _
    $region11: #{tpu_custom_call.1} parent=1 // pred_check_branch
      %16 = sbr.rel (0) target = $region13
    $region12: #{tpu_custom_call.1} parent=1 // pred_region
      _
    $region13: #{tpu_custom_call.1} parent=1 // pred_fallthru
      _
    // Predicated region
    $region14: #{tpu_custom_call.1} parent=1 // pred_check
      _
    $region15: #{tpu_custom_call.1} parent=1 // pred_check_branch
      %18 = sbr.rel (0) target = $region17
    $region16: #{tpu_custom_call.1} parent=1 // pred_region
      _
    $region17: #{tpu_custom_call.1} parent=1 // pred_fallthru
      _
    // Predicated region
    $region18: #{tpu_custom_call.1} parent=1 // pred_check
      _
    $region19: #{tpu_custom_call.1} parent=1 // pred_check_branch
      %20 = sbr.rel (0) target = $region21
    $region20: #{tpu_custom_call.1} parent=1 // pred_region
      _
    $region21: #{tpu_custom_call.1} parent=1 // pred_fallthru
      _
    %v21 = vld [vmem:[%s0] sm:$0xff]
    %v22 = vld [vmem:[%s0 + $0x8] sm:$0xff]
    %v23 = vmax.f32 %v21, 0.0
    %v24 = vmax.f32 %v22, 0.0
    %v25 = vld [vmem:[%s1] sm:$0xff]
    %v26 = vld [vmem:[%s1 + $0x8] sm:$0xff]
    %v27 = vld [vmem:[%s1 + $0x10] sm:$0xff]
    %v28 = vld [vmem:[%s1 + $0x18] sm:$0xff]
    %v29 = vld [vmem:[%s2] sm:$0x1]
    %v31 = vlaneseq
    %v32 = vshrl.u32 %v31, 7
    %v33 = vsub.s32 0, %v32
    %v34 = vrot.slane %v29, %v33
    %vm36 = vcmask 261120
    %v38 = vsel %vm36, %v23, 0
    %v41 = vsel %vm36, %v24, 0
    %43 = vmatprep.subr.mxu0 0.0
    %44 = vmatpush1.msra.mxu0 %v25
    %45 = vmatprep.subr.mxu0 0.0
    %46 = vmatpush1.msra.mxu0 %v26
    %47 = vmatprep.subr.mxu0 0.0
    %48 = vmatpush1.msra.mxu0 %v27
    %49 = vmatprep.subr.mxu0 0.0
    %50 = vmatpush1.msra.mxu0 %v28
    %51 = vmatprep.subr.mxu0 0.0
    %52 = vmatpush1.msra.mxu0 0.0
    %53 = vmatprep.subr.mxu0 0.0
    %54 = vmatpush1.msra.mxu0 0.0
    %55 = vmatprep.subr.mxu0 0.0
    %56 = vmatpush1.msra.mxu0 0.0
    %57 = vmatprep.subr.mxu0 0.0
    %58 = vmatpush1.msra.mxu0 0.0
    %59 = vmatprep.subr.mxu0 0.0
    %60 = vmatpush1.msra.mxu0 0.0
    %61 = vmatprep.subr.mxu0 0.0
    %62 = vmatpush1.msra.mxu0 0.0
    %63 = vmatprep.subr.mxu0 0.0
    %64 = vmatpush1.msra.mxu0 0.0
    %65 = vmatprep.subr.mxu0 0.0
    %66 = vmatpush1.msra.mxu0 0.0
    %67 = vmatprep.subr.mxu0 0.0
    %68 = vmatpush1.msra.mxu0 0.0
    %69 = vmatprep.subr.mxu0 0.0
    %70 = vmatpush1.msra.mxu0 0.0
    %71 = vmatprep.subr.mxu0 0.0
    %72 = vmatpush1.msra.mxu0 0.0
    %73 = vmatprep.subr.mxu0 0.0
    %74 = vmatpush1.msra.mxu0 0.0
    %75 = vmatprep.subr.mxu0 0.0
    %76 = vmatpush1.msra.mxu0 0.0
    %77 = vmatprep.subr.mxu0 0.0
    %78 = vmatpush1.msra.mxu0 0.0
    %79 = vmatprep.subr.mxu0 0.0
    %80 = vmatpush1.msra.mxu0 0.0
    %81 = vmatprep.subr.mxu0 0.0
    %82 = vmatpush1.msra.mxu0 0.0
    %83 = vmatprep.subr.mxu0 0.0
    %84 = vmatpush1.msra.mxu0 0.0
    %85 = vmatprep.subr.mxu0 0.0
    %86 = vmatpush1.msra.mxu0 0.0
    %87 = vmatprep.subr.mxu0 0.0
    %88 = vmatpush1.msra.mxu0 0.0
    %89 = vmatprep.subr.mxu0 0.0
    %90 = vmatpush1.msra.mxu0 0.0
    %91 = vmatprep.subr.mxu0 0.0
    %92 = vmatpush1.msra.mxu0 0.0
    %93 = vmatprep.subr.mxu0 0.0
    %94 = vmatpush1.msra.mxu0 0.0
    %95 = vmatprep.subr.mxu0 0.0
    %96 = vmatpush1.msra.mxu0 0.0
    %97 = vmatprep.subr.mxu0 0.0
    %98 = vmatpush1.msra.mxu0 0.0
    %99 = vmatprep.subr.mxu0 0.0
    %100 = vmatpush1.msra.mxu0 0.0
    %101 = vmatprep.subr.mxu0 0.0
    %102 = vmatpush1.msra.mxu0 0.0
    %103 = vmatprep.subr.mxu0 0.0
    %104 = vmatpush1.msra.mxu0 0.0
    %105 = vmatprep.subr.mxu0 0.0
    %106 = vmatpush1.msra.mxu0 0.0
    %107 = vmatprep.mubr.f32.mxu0 0.0
    %108 = vmatmul.mubr.f32.gmra.mrb[0].mxu0 %v38
    %v109 = vpop.f32.mrb[0].mxu0
    %v110 = vadd.f32 %v34, %v109
    %v111 = vpop.f32.mrb[0].mxu0
    %112 = vmatprep.mubr.f32.mxu0 0.0
    %113 = vmatmul.mubr.f32.gmra.mrb[0].mxu0 %v41
    %v114 = vpop.f32.mrb[0].mxu0
    %v115 = vadd.f32 %v34, %v114
    %v116 = vpop.f32.mrb[0].mxu0
    %117 = vdwg.mxu0
    %v118 = vmax.f32 %v110, 0.0
    %v119 = vmax.f32 %v115, 0.0
    %v120 = vld [vmem:[%s3] sm:$0xff]
    %v121 = vld [vmem:[%s4] sm:$0x1]
    %v123 = vlaneseq
    %v124 = vshrl.u32 %v123, 7
    %v125 = vsub.s32 0, %v124
    %v126 = vrot.slane %v121, %v125
    %vm128 = vcmask 64512
    %v130 = vsel %vm128, %v118, 0
    %v133 = vsel %vm128, %v119, 0
    %135 = vmatprep.subr.mxu0 0.0
    %136 = vmatpush1.msra.mxu0 %v120
    %137 = vmatprep.subr.mxu0 0.0
    %138 = vmatpush1.msra.mxu0 0.0
    %139 = vmatprep.subr.mxu0 0.0
    %140 = vmatpush1.msra.mxu0 0.0
    %141 = vmatprep.subr.mxu0 0.0
    %142 = vmatpush1.msra.mxu0 0.0
    %143 = vmatprep.subr.mxu0 0.0
    %144 = vmatpush1.msra.mxu0 0.0
    %145 = vmatprep.subr.mxu0 0.0
    %146 = vmatpush1.msra.mxu0 0.0
    %147 = vmatprep.subr.mxu0 0.0
    %148 = vmatpush1.msra.mxu0 0.0
    %149 = vmatprep.subr.mxu0 0.0
    %150 = vmatpush1.msra.mxu0 0.0
    %151 = vmatprep.subr.mxu0 0.0
    %152 = vmatpush1.msra.mxu0 0.0
    %153 = vmatprep.subr.mxu0 0.0
    %154 = vmatpush1.msra.mxu0 0.0
    %155 = vmatprep.subr.mxu0 0.0
    %156 = vmatpush1.msra.mxu0 0.0
    %157 = vmatprep.subr.mxu0 0.0
    %158 = vmatpush1.msra.mxu0 0.0
    %159 = vmatprep.subr.mxu0 0.0
    %160 = vmatpush1.msra.mxu0 0.0
    %161 = vmatprep.subr.mxu0 0.0
    %162 = vmatpush1.msra.mxu0 0.0
    %163 = vmatprep.subr.mxu0 0.0
    %164 = vmatpush1.msra.mxu0 0.0
    %165 = vmatprep.subr.mxu0 0.0
    %166 = vmatpush1.msra.mxu0 0.0
    %167 = vmatprep.subr.mxu0 0.0
    %168 = vmatpush1.msra.mxu0 0.0
    %169 = vmatprep.subr.mxu0 0.0
    %170 = vmatpush1.msra.mxu0 0.0
    %171 = vmatprep.subr.mxu0 0.0
    %172 = vmatpush1.msra.mxu0 0.0
    %173 = vmatprep.subr.mxu0 0.0
    %174 = vmatpush1.msra.mxu0 0.0
    %175 = vmatprep.subr.mxu0 0.0
    %176 = vmatpush1.msra.mxu0 0.0
    %177 = vmatprep.subr.mxu0 0.0
    %178 = vmatpush1.msra.mxu0 0.0
    %179 = vmatprep.subr.mxu0 0.0
    %180 = vmatpush1.msra.mxu0 0.0
    %181 = vmatprep.subr.mxu0 0.0
    %182 = vmatpush1.msra.mxu0 0.0
    %183 = vmatprep.subr.mxu0 0.0
    %184 = vmatpush1.msra.mxu0 0.0
    %185 = vmatprep.subr.mxu0 0.0
    %186 = vmatpush1.msra.mxu0 0.0
    %187 = vmatprep.subr.mxu0 0.0
    %188 = vmatpush1.msra.mxu0 0.0
    %189 = vmatprep.subr.mxu0 0.0
    %190 = vmatpush1.msra.mxu0 0.0
    %191 = vmatprep.subr.mxu0 0.0
    %192 = vmatpush1.msra.mxu0 0.0
    %193 = vmatprep.subr.mxu0 0.0
    %194 = vmatpush1.msra.mxu0 0.0
    %195 = vmatprep.subr.mxu0 0.0
    %196 = vmatpush1.msra.mxu0 0.0
    %197 = vmatprep.subr.mxu0 0.0
    %198 = vmatpush1.msra.mxu0 0.0
    %199 = vmatprep.mubr.f32.mxu0 0.0
    %200 = vmatmul.mubr.f32.gmra.mrb[0].mxu0 %v130
    %v201 = vpop.f32.mrb[0].mxu0
    %v202 = vadd.f32 %v126, %v201
    %v203 = vpop.f32.mrb[0].mxu0
    %204 = vmatprep.mubr.f32.mxu0 0.0
    %205 = vmatmul.mubr.f32.gmra.mrb[0].mxu0 %v133
    %v206 = vpop.f32.mrb[0].mxu0
    %v207 = vadd.f32 %v126, %v206
    %v208 = vpop.f32.mrb[0].mxu0
    %209 = vdwg.mxu0
    %vm210 = vcmask 195584
    %211 = vst.msk [vmem:[#allocation2] sm:$0xff] %vm210, %v202
    %212 = vst.msk [vmem:[#allocation2 + $0x8] sm:$0xff] %vm210, %v207
    // Predicated region
    $region22: #{tpu_custom_call.1} parent=1 // pred_check
      _
    $region23: #{tpu_custom_call.1} parent=1 // pred_check_branch
      %214 = sbr.rel (0) target = $region25
    $region24: #{tpu_custom_call.1} parent=1 // pred_region
      %s216 = ssub.s32 256, 256
      %217 = vsyncadd [#allocation3], %s216
      %s218 = sshll.u32 [#allocation2], 4
      %s219 = int_to_ptr.vmem [resolvable:$true] %s218
      %224 = dma.vmem_to_hbm [thread:$0]  %s219, 256, %s5, [#allocation3], 128, 128, 8
    $region25: #{tpu_custom_call.1} parent=1 // pred_fallthru
      _
    // Predicated region
    $region26: #{tpu_custom_call.1} parent=1 // pred_check
      _
    $region27: #{tpu_custom_call.1} parent=1 // pred_check_branch
      %226 = sbr.rel (0) target = $region29
    $region28: #{tpu_custom_call.1} parent=1 // pred_region
      %227 = dma.done [#allocation3], 256
    $region29: #{tpu_custom_call.1} parent=1 // pred_fallthru
      _
    %228 = vsyncpa [#allocation3], 1

// kernel: tpu_custom_call.1
$region0: #{tpu_custom_call.1}
  #allocation0 [shape = 'u32[]', space=smem, size = 0x4, offset = 0x4, fixed_abs, tag = 'smem constant byte address 0x4 - core index']
  #allocation1 [shape = 'u32[144,128]{1,0:T(1,128)}', space=vmem, size = 0x12000, scoped, tag = 'internal scratch']
  %s0 = inlined_call_operand.vmem [shape: f32[16,32], index: 0, kind: input, shape index: {}]
  %s1 = inlined_call_operand.vmem [shape: f32[32,8], index: 1, kind: input, shape index: {}]
  %s2 = inlined_call_operand.vmem [shape: f32[1,8], index: 2, kind: input, shape index: {}]
  %s3 = inlined_call_operand.vmem [shape: f32[8,24], index: 3, kind: input, shape index: {}]
  %s4 = inlined_call_operand.vmem [shape: f32[1,24], index: 4, kind: input, shape index: {}]
  %s5 = inlined_call_operand.hbm [shape: f32[16,24], index: 5, kind: output, shape index: {}]
  %s6 = sld [smem:[#allocation0]]
  $region30: #{tpu_custom_call.1} parent=0
    _
  %s8 = ssub.s32 1, %s6
  %s9 = scalar_select 0, %s8, %s6
  $region1: #{tpu_custom_call.1} parent=0
    #allocation2 [shape = 'u8[8192]{0}', space=vmem, size = 0x2000, scoped, tag = 'output window, operand 0, single buffered']
    #allocation3 [shape = 's32[1]{0}', space=sflag, size = 0x4, scoped, tag = 'scoped memory for tpu_custom_call.1']
    %10 = vsyncpa [#allocation3], 0
    // Predicated region
    $region2: #{tpu_custom_call.1} parent=1 // pred_check
      _
    $region3: #{tpu_custom_call.1} parent=1 // pred_check_branch
      %12 = sbr.rel (0) target = $region5
    $region4: #{tpu_custom_call.1} parent=1 // pred_region
      _
    $region5: #{tpu_custom_call.1} parent=1 // pred_fallthru
      _
    // Predicated region
    $region6: #{tpu_custom_call.1} parent=1 // pred_check
      _
    $region7: #{tpu_custom_call.1} parent=1 // pred_check_branch
      %14 = sbr.rel (0) target = $region9
    $region8: #{tpu_custom_call.1} parent=1 // pred_region
      _
    $region9: #{tpu_custom_call.1} parent=1 // pred_fallthru
      _
    // Predicated region
    $region10: #{tpu_custom_call.1} parent=1 // pred_check
      _
    $region11: #{tpu_custom_call.1} parent=1 // pred_check_branch
      %16 = sbr.rel (0) target = $region13
    $region12: #{tpu_custom_call.1} parent=1 // pred_region
      _
    $region13: #{tpu_custom_call.1} parent=1 // pred_fallthru
      _
    // Predicated region
    $region14: #{tpu_custom_call.1} parent=1 // pred_check
      _
    $region15: #{tpu_custom_call.1} parent=1 // pred_check_branch
      %18 = sbr.rel (0) target = $region17
    $region16: #{tpu_custom_call.1} parent=1 // pred_region
      _
    $region17: #{tpu_custom_call.1} parent=1 // pred_fallthru
      _
    // Predicated region
    $region18: #{tpu_custom_call.1} parent=1 // pred_check
      _
    $region19: #{tpu_custom_call.1} parent=1 // pred_check_branch
      %20 = sbr.rel (0) target = $region21
    $region20: #{tpu_custom_call.1} parent=1 // pred_region
      _
    $region21: #{tpu_custom_call.1} parent=1 // pred_fallthru
      _
    %v21 = vld [vmem:[%s0] sm:$0xff]
    %v22 = vld [vmem:[%s0 + $0x8] sm:$0xff]
    %v23 = vmax.f32 %v21, 0.0
    %v24 = vmax.f32 %v22, 0.0
    %v25 = vld [vmem:[%s1] sm:$0xff]
    %v26 = vld [vmem:[%s1 + $0x8] sm:$0xff]
    %v27 = vld [vmem:[%s1 + $0x10] sm:$0xff]
    %v28 = vld [vmem:[%s1 + $0x18] sm:$0xff]
    %v29 = vld [vmem:[%s2] sm:$0x1]
    %v31 = vlaneseq
    %v32 = vshrl.u32 %v31, 7
    %v33 = vsub.s32 0, %v32
    %v34 = vrot.slane %v29, %v33
    %vm36 = vcmask 261120
    %v38 = vsel %vm36, %v23, 0
    %v41 = vsel %vm36, %v24, 0
    %43 = vmatprep.subr.mxu0 0.0
    %44 = vmatpush1.msra.mxu0 %v25
    %45 = vmatprep.subr.mxu0 0.0
    %46 = vmatpush1.msra.mxu0 %v26
    %47 = vmatprep.subr.mxu0 0.0
    %48 = vmatpush1.msra.mxu0 %v27
    %49 = vmatprep.subr.mxu0 0.0
    %50 = vmatpush1.msra.mxu0 %v28
    %51 = vmatprep.subr.mxu0 0.0
    %52 = vmatpush1.msra.mxu0 0.0
    %53 = vmatprep.subr.mxu0 0.0
    %54 = vmatpush1.msra.mxu0 0.0
    %55 = vmatprep.subr.mxu0 0.0
    %56 = vmatpush1.msra.mxu0 0.0
    %57 = vmatprep.subr.mxu0 0.0
    %58 = vmatpush1.msra.mxu0 0.0
    %59 = vmatprep.subr.mxu0 0.0
    %60 = vmatpush1.msra.mxu0 0.0
    %61 = vmatprep.subr.mxu0 0.0
    %62 = vmatpush1.msra.mxu0 0.0
    %63 = vmatprep.subr.mxu0 0.0
    %64 = vmatpush1.msra.mxu0 0.0
    %65 = vmatprep.subr.mxu0 0.0
    %66 = vmatpush1.msra.mxu0 0.0
    %67 = vmatprep.subr.mxu0 0.0
    %68 = vmatpush1.msra.mxu0 0.0
    %69 = vmatprep.subr.mxu0 0.0
    %70 = vmatpush1.msra.mxu0 0.0
    %71 = vmatprep.subr.mxu0 0.0
    %72 = vmatpush1.msra.mxu0 0.0
    %73 = vmatprep.subr.mxu0 0.0
    %74 = vmatpush1.msra.mxu0 0.0
    %75 = vmatprep.subr.mxu0 0.0
    %76 = vmatpush1.msra.mxu0 0.0
    %77 = vmatprep.subr.mxu0 0.0
    %78 = vmatpush1.msra.mxu0 0.0
    %79 = vmatprep.subr.mxu0 0.0
    %80 = vmatpush1.msra.mxu0 0.0
    %81 = vmatprep.subr.mxu0 0.0
    %82 = vmatpush1.msra.mxu0 0.0
    %83 = vmatprep.subr.mxu0 0.0
    %84 = vmatpush1.msra.mxu0 0.0
    %85 = vmatprep.subr.mxu0 0.0
    %86 = vmatpush1.msra.mxu0 0.0
    %87 = vmatprep.subr.mxu0 0.0
    %88 = vmatpush1.msra.mxu0 0.0
    %89 = vmatprep.subr.mxu0 0.0
    %90 = vmatpush1.msra.mxu0 0.0
    %91 = vmatprep.subr.mxu0 0.0
    %92 = vmatpush1.msra.mxu0 0.0
    %93 = vmatprep.subr.mxu0 0.0
    %94 = vmatpush1.msra.mxu0 0.0
    %95 = vmatprep.subr.mxu0 0.0
    %96 = vmatpush1.msra.mxu0 0.0
    %97 = vmatprep.subr.mxu0 0.0
    %98 = vmatpush1.msra.mxu0 0.0
    %99 = vmatprep.subr.mxu0 0.0
    %100 = vmatpush1.msra.mxu0 0.0
    %101 = vmatprep.subr.mxu0 0.0
    %102 = vmatpush1.msra.mxu0 0.0
    %103 = vmatprep.subr.mxu0 0.0
    %104 = vmatpush1.msra.mxu0 0.0
    %105 = vmatprep.subr.mxu0 0.0
    %106 = vmatpush1.msra.mxu0 0.0
    %107 = vmatprep.mubr.f32.mxu0 0.0
    %108 = vmatmul.mubr.f32.gmra.mrb[0].mxu0 %v38
    %v109 = vpop.f32.mrb[0].mxu0
    %v110 = vadd.f32 %v34, %v109
    %v111 = vpop.f32.mrb[0].mxu0
    %112 = vmatprep.mubr.f32.mxu0 0.0
    %113 = vmatmul.mubr.f32.gmra.mrb[0].mxu0 %v41
    %v114 = vpop.f32.mrb[0].mxu0
    %v115 = vadd.f32 %v34, %v114
    %v116 = vpop.f32.mrb[0].mxu0
    %117 = vdwg.mxu0
    %v118 = vmax.f32 %v110, 0.0
    %v119 = vmax.f32 %v115, 0.0
    %v120 = vld [vmem:[%s3] sm:$0xff]
    %v121 = vld [vmem:[%s4] sm:$0x1]
    %v123 = vlaneseq
    %v124 = vshrl.u32 %v123, 7
    %v125 = vsub.s32 0, %v124
    %v126 = vrot.slane %v121, %v125
    %vm128 = vcmask 64512
    %v130 = vsel %vm128, %v118, 0
    %v133 = vsel %vm128, %v119, 0
    %135 = vmatprep.subr.mxu0 0.0
    %136 = vmatpush1.msra.mxu0 %v120
    %137 = vmatprep.subr.mxu0 0.0
    %138 = vmatpush1.msra.mxu0 0.0
    %139 = vmatprep.subr.mxu0 0.0
    %140 = vmatpush1.msra.mxu0 0.0
    %141 = vmatprep.subr.mxu0 0.0
    %142 = vmatpush1.msra.mxu0 0.0
    %143 = vmatprep.subr.mxu0 0.0
    %144 = vmatpush1.msra.mxu0 0.0
    %145 = vmatprep.subr.mxu0 0.0
    %146 = vmatpush1.msra.mxu0 0.0
    %147 = vmatprep.subr.mxu0 0.0
    %148 = vmatpush1.msra.mxu0 0.0
    %149 = vmatprep.subr.mxu0 0.0
    %150 = vmatpush1.msra.mxu0 0.0
    %151 = vmatprep.subr.mxu0 0.0
    %152 = vmatpush1.msra.mxu0 0.0
    %153 = vmatprep.subr.mxu0 0.0
    %154 = vmatpush1.msra.mxu0 0.0
    %155 = vmatprep.subr.mxu0 0.0
    %156 = vmatpush1.msra.mxu0 0.0
    %157 = vmatprep.subr.mxu0 0.0
    %158 = vmatpush1.msra.mxu0 0.0
    %159 = vmatprep.subr.mxu0 0.0
    %160 = vmatpush1.msra.mxu0 0.0
    %161 = vmatprep.subr.mxu0 0.0
    %162 = vmatpush1.msra.mxu0 0.0
    %163 = vmatprep.subr.mxu0 0.0
    %164 = vmatpush1.msra.mxu0 0.0
    %165 = vmatprep.subr.mxu0 0.0
    %166 = vmatpush1.msra.mxu0 0.0
    %167 = vmatprep.subr.mxu0 0.0
    %168 = vmatpush1.msra.mxu0 0.0
    %169 = vmatprep.subr.mxu0 0.0
    %170 = vmatpush1.msra.mxu0 0.0
    %171 = vmatprep.subr.mxu0 0.0
    %172 = vmatpush1.msra.mxu0 0.0
    %173 = vmatprep.subr.mxu0 0.0
    %174 = vmatpush1.msra.mxu0 0.0
    %175 = vmatprep.subr.mxu0 0.0
    %176 = vmatpush1.msra.mxu0 0.0
    %177 = vmatprep.subr.mxu0 0.0
    %178 = vmatpush1.msra.mxu0 0.0
    %179 = vmatprep.subr.mxu0 0.0
    %180 = vmatpush1.msra.mxu0 0.0
    %181 = vmatprep.subr.mxu0 0.0
    %182 = vmatpush1.msra.mxu0 0.0
    %183 = vmatprep.subr.mxu0 0.0
    %184 = vmatpush1.msra.mxu0 0.0
    %185 = vmatprep.subr.mxu0 0.0
    %186 = vmatpush1.msra.mxu0 0.0
    %187 = vmatprep.subr.mxu0 0.0
    %188 = vmatpush1.msra.mxu0 0.0
    %189 = vmatprep.subr.mxu0 0.0
    %190 = vmatpush1.msra.mxu0 0.0
    %191 = vmatprep.subr.mxu0 0.0
    %192 = vmatpush1.msra.mxu0 0.0
    %193 = vmatprep.subr.mxu0 0.0
    %194 = vmatpush1.msra.mxu0 0.0
    %195 = vmatprep.subr.mxu0 0.0
    %196 = vmatpush1.msra.mxu0 0.0
    %197 = vmatprep.subr.mxu0 0.0
    %198 = vmatpush1.msra.mxu0 0.0
    %199 = vmatprep.mubr.f32.mxu0 0.0
    %200 = vmatmul.mubr.f32.gmra.mrb[0].mxu0 %v130
    %v201 = vpop.f32.mrb[0].mxu0
    %v202 = vadd.f32 %v126, %v201
    %v203 = vpop.f32.mrb[0].mxu0
    %204 = vmatprep.mubr.f32.mxu0 0.0
    %205 = vmatmul.mubr.f32.gmra.mrb[0].mxu0 %v133
    %v206 = vpop.f32.mrb[0].mxu0
    %v207 = vadd.f32 %v126, %v206
    %v208 = vpop.f32.mrb[0].mxu0
    %209 = vdwg.mxu0
    %vm210 = vcmask 195584
    %211 = vst.msk [vmem:[#allocation2] sm:$0xff] %vm210, %v202
    %212 = vst.msk [vmem:[#allocation2 + $0x8] sm:$0xff] %vm210, %v207
    // Predicated region
    $region22: #{tpu_custom_call.1} parent=1 // pred_check
      _
    $region23: #{tpu_custom_call.1} parent=1 // pred_check_branch
      %214 = sbr.rel (0) target = $region25
    $region24: #{tpu_custom_call.1} parent=1 // pred_region
      %s216 = ssub.s32 256, 256
      %217 = vsyncadd [#allocation3], %s216
      %s218 = sshll.u32 [#allocation2], 4
      %s219 = int_to_ptr.vmem [resolvable:$true] %s218
      %224 = dma.vmem_to_hbm [thread:$0]  %s219, 256, %s5, [#allocation3], 128, 128, 8
    $region25: #{tpu_custom_call.1} parent=1 // pred_fallthru
      _
    // Predicated region
    $region26: #{tpu_custom_call.1} parent=1 // pred_check
      _
    $region27: #{tpu_custom_call.1} parent=1 // pred_check_branch
      %226 = sbr.rel (0) target = $region29
    $region28: #{tpu_custom_call.1} parent=1 // pred_region
      %227 = dma.done [#allocation3], 256
    $region29: #{tpu_custom_call.1} parent=1 // pred_fallthru
      _
    %228 = vsyncpa [#allocation3], 1

</llo_original>
